<compile_context>
chip_gen: v6e
topology: v6e:2x2x1
jax: 0.10.0
libtpu: 0.0.40
codegen_flags: <defaults>
</compile_context>

<pallas_src>
import jax
import jax.numpy as jnp
from jax.experimental import pallas as pl
from jax.experimental.pallas import tpu as pltpu


def _attention0_kernel(enc_ref, wet_ref, hb_ref, v_ref, out_ref):
    """One T-tile of Attention_0.forward.

    enc_ref: (B, Tt, H)
    wet_ref: (H, H)  == attn.weight[:, H:].T   (acts on encoder_outputs)
    hb_ref:  (B, H)  == hidden @ attn.weight[:, :H].T + bias   (hoisted, grid-invariant)
    v_ref:   (1, H)
    out_ref: (B, Tt)  lane-dense 2-D output (reshaped to (B, 1, T) in the wrapper)
    """
    B, Tt, H = enc_ref.shape

    wet = wet_ref[...]                                     # (H, H), pre-transposed
    hb = hb_ref[...]                                       # (B, H)
    v_row = v_ref[...]                                     # (1, H)

    # Single fused MXU matmul over all batch rows: (B*Tt, H) @ (H, H).
    # Layout-free collapse of the leading dims since Tt % 8 == 0 (tile_t is 128-aligned).
    big = jnp.dot(enc_ref[...].reshape(B * Tt, H), wet,
                  preferred_element_type=jnp.float32)      # (B*Tt, H)

    # Per-batch pre-softmax energies; hidden half of the Linear + bias folded in via hb.
    pre = [big[b * Tt:(b + 1) * Tt, :] + hb[b:b + 1, :] for b in range(B)]   # B x (Tt, H)

    # F.softmax with no dim on a 3-D tensor -> legacy implicit dim=0 (batch) softmax.
    m = pre[0]
    for b in range(1, B):
        m = jnp.maximum(m, pre[b])
    ex = [jnp.exp(p - m) for p in pre]
    denom = ex[0]
    for b in range(1, B):
        denom = denom + ex[b]
    inv = pl.reciprocal(denom, approx=False)               # exact: keeps 1e-5 tolerance

    # bmm(v (B,1,H), softmax^T (B,H,T)) -> per-b sum_h v[h]*sm[b,t,h]; fold v into inv
    # once per tile, then ReLU and a lane-dense (B, Tt) store.
    w_t = inv * v_row                                      # (Tt, H), once per tile
    for b in range(B):
        score_b = jnp.sum(ex[b] * w_t, axis=-1)            # (Tt,)  XLU reduce (free slot)
        out_ref[b, :] = jnp.maximum(score_b, 0.0).astype(out_ref.dtype)


def attention0_forward(hidden, encoder_outputs, w, b, v):
    """hidden: (B,H), encoder_outputs: (B,T,H), w: (H,2H), b: (H,), v: (H,) -> (B,1,T)."""
    B, T, H = encoder_outputs.shape

    # Layout / grid-invariant plumbing in the wrapper (cheap XLA ops, not per-tile work):
    hb = jnp.dot(hidden, jnp.transpose(w[:, :H])) + b[None, :]    # (B, H) hidden half + bias
    wet = jnp.transpose(w[:, H:])                                  # (H, H) encoder half
    v2 = v.reshape(1, H)

    # ---- tile sizing from an explicit VMEM budget (respects v7x's 32 MiB scoped default;
    #      v5e/v6e have more headroom) ----
    # per T-row cost: double-buffered enc block (2*B*H*4) + out block (2*B*4)
    #                + live f32 intermediates big/pre/ex/inv/w_t (~(3B+2)*H*4)
    vmem_budget = 24 * 1024 * 1024
    bytes_per_row = 2 * B * H * 4 + 2 * B * 4 + (3 * B + 2) * H * 4
    t128 = pl.cdiv(T, 128) * 128
    tile_t = max(128, min(t128, (vmem_budget // bytes_per_row) // 128 * 128))
    # Prefer >= 2 grid steps when T allows so "parallel" T-tiles can shard over v7x's 2 TCs.
    if pl.cdiv(T, tile_t) < 2 and tile_t > 128:
        tile_t = max(128, (tile_t // 2) // 128 * 128)

    # Zero-pad T to a multiple of tile_t: the softmax reduction axis is B, so padded
    # columns only produce finite values that are sliced away below.
    T_pad = pl.cdiv(T, tile_t) * tile_t
    enc = encoder_outputs
    if T_pad != T:
        enc = jnp.pad(encoder_outputs, ((0, 0), (0, T_pad - T), (0, 0)))

    out2d = pl.pallas_call(
        _attention0_kernel,
        out_shape=jax.ShapeDtypeStruct((B, T_pad), jnp.float32),
        grid=(T_pad // tile_t,),
        in_specs=[
            pl.BlockSpec((B, tile_t, H), lambda t: (0, t, 0)),    # streamed per tile
            pl.BlockSpec((H, H), lambda t: (0, 0)),               # grid-invariant weight
            pl.BlockSpec((B, H), lambda t: (0, 0)),               # grid-invariant hb
            pl.BlockSpec((1, H), lambda t: (0, 0)),               # grid-invariant v
        ],
        out_specs=pl.BlockSpec((B, tile_t), lambda t: (0, t)),
        compiler_params=pltpu.CompilerParams(
            dimension_semantics=("parallel",),     # T tiles independent (reduce axis = B)
            vmem_limit_bytes=32 * 1024 * 1024),
    )(enc, wet, hb, v2)

    # Restore the module's (B, 1, T) output shape and strip the T padding outside
    # the kernel (store stays lane-dense inside).
    return out2d[:, None, :T]


def _reference(hidden, encoder_outputs, w, b, v):
    B, T, H = encoder_outputs.shape
    h = jnp.broadcast_to(hidden[:, None, :], (B, T, H))
    x = jnp.concatenate([h, encoder_outputs], axis=-1)            # (B, T, 2H)
    e = jnp.einsum("btk,hk->bth", x, w) + b                       # (B, T, H)
    e = jax.nn.softmax(e, axis=0)                                 # implicit dim=0 softmax
    scores = jnp.einsum("h,bth->bt", v, e)[:, None, :]            # (B, 1, T)
    return jax.nn.relu(scores)


if __name__ == "__main__":
    B, T, H = 2, 8, 32

    key = jax.random.PRNGKey(0)
    k_hid, k_enc, k_w, k_b, k_v = jax.random.split(key, 5)

    hidden = jax.random.normal(k_hid, (B, H), dtype=jnp.float32)
    encoder_outputs = jax.random.normal(k_enc, (B, T, H), dtype=jnp.float32)

    # Deterministic parameter init (nn.Linear-style uniform bounds, synthetic values).
    bound_w = 1.0 / jnp.sqrt(2.0 * H)
    w = jax.random.uniform(k_w, (H, 2 * H), minval=-bound_w, maxval=bound_w, dtype=jnp.float32)
    b = jax.random.uniform(k_b, (H,), minval=-bound_w, maxval=bound_w, dtype=jnp.float32)
    stdv = 1.0 / jnp.sqrt(1.0 * H)
    v = jax.random.uniform(k_v, (H,), minval=-stdv, maxval=stdv, dtype=jnp.float32)

    out = attention0_forward(hidden, encoder_outputs, w, b, v)
    out = jax.block_until_ready(out)

    ref = _reference(hidden, encoder_outputs, w, b, v)
    assert out.shape == (B, 1, T), out.shape
    assert jnp.allclose(out, ref, atol=1e-5, rtol=1e-5), float(jnp.max(jnp.abs(out - ref)))

    print("KERNEL_OK")
</pallas_src>

<mosaic_0001>
module attributes {stable_mosaic.version = 11 : i64} {
  func.func @_attention0_kernel(%arg0: i32, %arg1: memref<2x128x32xf32, #tpu.memory_space<vmem>>, %arg2: memref<32x32xf32, #tpu.memory_space<vmem>>, %arg3: memref<2x32xf32, #tpu.memory_space<vmem>>, %arg4: memref<1x32xf32, #tpu.memory_space<vmem>>, %arg5: memref<2x128xf32, #tpu.memory_space<vmem>>) attributes {dimension_semantics = [#tpu.dimension_semantics<parallel>], iteration_bounds = array<i64: 1>, scalar_prefetch = 0 : i64, scratch_operands = 0 : i64, tpu.core_type = #tpu.core_type<tc>, window_params = [{transform_indices = @transform_0, window_bounds = array<i64: 2, 128, 32>}, {pipeline_mode = #tpu.pipeline_mode<synchronous>, transform_indices = @transform_1, window_bounds = array<i64: 32, 32>}, {pipeline_mode = #tpu.pipeline_mode<synchronous>, transform_indices = @transform_2, window_bounds = array<i64: 2, 32>}, {pipeline_mode = #tpu.pipeline_mode<synchronous>, transform_indices = @transform_3, window_bounds = array<i64: 1, 32>}, {transform_indices = @transform_4, window_bounds = array<i64: 2, 128>}]} {
    %c0 = arith.constant 0 : index
    %c0_0 = arith.constant 0 : index
    %0 = vector.load %arg2[%c0, %c0_0] : memref<32x32xf32, #tpu.memory_space<vmem>>, vector<32x32xf32>
    %c0_1 = arith.constant 0 : index
    %c0_2 = arith.constant 0 : index
    %1 = vector.load %arg3[%c0_1, %c0_2] : memref<2x32xf32, #tpu.memory_space<vmem>>, vector<2x32xf32>
    %c0_3 = arith.constant 0 : index
    %c0_4 = arith.constant 0 : index
    %2 = vector.load %arg4[%c0_3, %c0_4] : memref<1x32xf32, #tpu.memory_space<vmem>>, vector<1x32xf32>
    %c0_5 = arith.constant 0 : index
    %c0_6 = arith.constant 0 : index
    %c0_7 = arith.constant 0 : index
    %3 = vector.load %arg1[%c0_5, %c0_6, %c0_7] : memref<2x128x32xf32, #tpu.memory_space<vmem>>, vector<2x128x32xf32>
    %4 = vector.shape_cast %3 : vector<2x128x32xf32> to vector<256x32xf32>
    %cst = arith.constant dense<0.000000e+00> : vector<256x32xf32>
    %5 = tpu.matmul %4, %0, %cst {dimension_numbers = #tpu.dot_dimension_numbers<[1], [0], [0], [1], [0, 0, 1, 1], [], []>} : vector<256x32xf32>, vector<32x32xf32>, vector<256x32xf32> -> vector<256x32xf32>
    %6 = vector.extract_strided_slice %5 {offsets = [0, 0], sizes = [128, 32], strides = [1, 1]} : vector<256x32xf32> to vector<128x32xf32>
    %7 = vector.extract_strided_slice %1 {offsets = [0, 0], sizes = [1, 32], strides = [1, 1]} : vector<2x32xf32> to vector<1x32xf32>
    %8 = vector.broadcast %7 : vector<1x32xf32> to vector<128x32xf32>
    %9 = arith.addf %6, %8 : vector<128x32xf32>
    %10 = vector.extract_strided_slice %5 {offsets = [128, 0], sizes = [128, 32], strides = [1, 1]} : vector<256x32xf32> to vector<128x32xf32>
    %11 = vector.extract_strided_slice %1 {offsets = [1, 0], sizes = [1, 32], strides = [1, 1]} : vector<2x32xf32> to vector<1x32xf32>
    %12 = vector.broadcast %11 : vector<1x32xf32> to vector<128x32xf32>
    %13 = arith.addf %10, %12 : vector<128x32xf32>
    %14 = arith.maximumf %9, %13 : vector<128x32xf32>
    %15 = arith.subf %9, %14 : vector<128x32xf32>
    %16 = math.exp %15 : vector<128x32xf32>
    %17 = arith.subf %13, %14 : vector<128x32xf32>
    %18 = math.exp %17 : vector<128x32xf32>
    %19 = arith.addf %16, %18 : vector<128x32xf32>
    %20 = tpu.reciprocal %19 : vector<128x32xf32> -> vector<128x32xf32>
    %21 = vector.broadcast %2 : vector<1x32xf32> to vector<128x32xf32>
    %22 = arith.mulf %20, %21 : vector<128x32xf32>
    %23 = arith.mulf %16, %22 : vector<128x32xf32>
    %cst_8 = arith.constant dense<0.000000e+00> : vector<128xf32>
    %24 = vector.multi_reduction <add>, %23, %cst_8 [1] : vector<128x32xf32> to vector<128xf32>
    %cst_9 = arith.constant 0.000000e+00 : f32
    %25 = vector.broadcast %cst_9 : f32 to vector<128xf32>
    %26 = arith.maximumf %24, %25 : vector<128xf32>
    %c0_10 = arith.constant 0 : index
    %c0_11 = arith.constant 0 : index
    %27 = vector.load %arg5[%c0_10, %c0_11] : memref<2x128xf32, #tpu.memory_space<vmem>>, vector<1x128xf32>
    %28 = vector.shape_cast %27 : vector<1x128xf32> to vector<128xf32>
    %29 = vector.shape_cast %26 : vector<128xf32> to vector<1x128xf32>
    tpu.vector_store %arg5[%c0_10, %c0_11], %29 {strides = array<i32>} : memref<2x128xf32, #tpu.memory_space<vmem>>, vector<1x128xf32>,
    %30 = arith.mulf %18, %22 : vector<128x32xf32>
    %cst_12 = arith.constant dense<0.000000e+00> : vector<128xf32>
    %31 = vector.multi_reduction <add>, %30, %cst_12 [1] : vector<128x32xf32> to vector<128xf32>
    %cst_13 = arith.constant 0.000000e+00 : f32
    %32 = vector.broadcast %cst_13 : f32 to vector<128xf32>
    %33 = arith.maximumf %31, %32 : vector<128xf32>
    %c1 = arith.constant 1 : index
    %c0_14 = arith.constant 0 : index
    %34 = vector.load %arg5[%c1, %c0_14] : memref<2x128xf32, #tpu.memory_space<vmem>>, vector<1x128xf32>
    %35 = vector.shape_cast %34 : vector<1x128xf32> to vector<128xf32>
    %36 = vector.shape_cast %33 : vector<128xf32> to vector<1x128xf32>
    tpu.vector_store %arg5[%c1, %c0_14], %36 {strides = array<i32>} : memref<2x128xf32, #tpu.memory_space<vmem>>, vector<1x128xf32>,
    return
  }
  func.func @transform_0(%arg0: i32) -> (i32, i32, i32) {
    %c0_i32 = arith.constant 0 : i32
    %c0_i32_0 = arith.constant 0 : i32
    %c0_i32_1 = arith.constant 0 : i32
    return %c0_i32, %arg0, %c0_i32_0 : i32, i32, i32
  }
  func.func @transform_1(%arg0: i32) -> (i32, i32) {
    %c0_i32 = arith.constant 0 : i32
    %c0_i32_0 = arith.constant 0 : i32
    %c0_i32_1 = arith.constant 0 : i32
    return %c0_i32, %c0_i32_0 : i32, i32
  }
  func.func @transform_2(%arg0: i32) -> (i32, i32) {
    %c0_i32 = arith.constant 0 : i32
    %c0_i32_0 = arith.constant 0 : i32
    %c0_i32_1 = arith.constant 0 : i32
    return %c0_i32, %c0_i32_0 : i32, i32
  }
  func.func @transform_3(%arg0: i32) -> (i32, i32) {
    %c0_i32 = arith.constant 0 : i32
    %c0_i32_0 = arith.constant 0 : i32
    %c0_i32_1 = arith.constant 0 : i32
    return %c0_i32, %c0_i32_0 : i32, i32
  }
  func.func @transform_4(%arg0: i32) -> (i32, i32) {
    %c0_i32 = arith.constant 0 : i32
    %c0_i32_0 = arith.constant 0 : i32
    return %c0_i32, %arg0 : i32, i32
  }
}

</mosaic_0001>

<llo_original>
// kernel: tpu_custom_call.1
$region0: #{tpu_custom_call.1}
  #allocation0 [shape = 'u32[]', space=smem, size = 0x4, offset = 0x4, fixed_abs, tag = 'smem constant byte address 0x4 - core index']
  #allocation1 [shape = 'u32[144,128]{1,0:T(1,128)}', space=vmem, size = 0x12000, scoped, tag = 'internal scratch']
  %s0 = inlined_call_operand.vmem [shape: f32[2,128,32], index: 0, kind: input, shape index: {}]
  %s1 = inlined_call_operand.vmem [shape: f32[32,32], index: 1, kind: input, shape index: {}]
  %s2 = inlined_call_operand.vmem [shape: f32[2,32], index: 2, kind: input, shape index: {}]
  %s3 = inlined_call_operand.vmem [shape: f32[1,32], index: 3, kind: input, shape index: {}]
  %s4 = inlined_call_operand.hbm [shape: f32[2,128], index: 4, kind: output, shape index: {}]
  %s5 = sld [smem:[#allocation0]]
  $region26: #{tpu_custom_call.1} parent=0
    _
  %s7 = ssub.s32 1, %s5
  %s8 = scalar_select 0, %s7, %s5
  $region1: #{tpu_custom_call.1} parent=0
    #allocation2 [shape = 'u8[1024]{0}', space=vmem, size = 0x400, scoped, tag = 'output window, operand 0, single buffered']
    #allocation3 [shape = 's32[1]{0}', space=sflag, size = 0x4, scoped, tag = 'scoped memory for tpu_custom_call.1']
    %9 = vsyncpa [#allocation3], 0
    // Predicated region
    $region2: #{tpu_custom_call.1} parent=1 // pred_check
      _
    $region3: #{tpu_custom_call.1} parent=1 // pred_check_branch
      %11 = sbr.rel (0) target = $region5
    $region4: #{tpu_custom_call.1} parent=1 // pred_region
      _
    $region5: #{tpu_custom_call.1} parent=1 // pred_fallthru
      _
    // Predicated region
    $region6: #{tpu_custom_call.1} parent=1 // pred_check
      _
    $region7: #{tpu_custom_call.1} parent=1 // pred_check_branch
      %13 = sbr.rel (0) target = $region9
    $region8: #{tpu_custom_call.1} parent=1 // pred_region
      _
    $region9: #{tpu_custom_call.1} parent=1 // pred_fallthru
      _
    // Predicated region
    $region10: #{tpu_custom_call.1} parent=1 // pred_check
      _
    $region11: #{tpu_custom_call.1} parent=1 // pred_check_branch
      %15 = sbr.rel (0) target = $region13
    $region12: #{tpu_custom_call.1} parent=1 // pred_region
      _
    $region13: #{tpu_custom_call.1} parent=1 // pred_fallthru
      _
    // Predicated region
    $region14: #{tpu_custom_call.1} parent=1 // pred_check
      _
    $region15: #{tpu_custom_call.1} parent=1 // pred_check_branch
      %17 = sbr.rel (0) target = $region17
    $region16: #{tpu_custom_call.1} parent=1 // pred_region
      _
    $region17: #{tpu_custom_call.1} parent=1 // pred_fallthru
      _
    %v18 = vld [vmem:[%s1] sm:$0xff]
    %v19 = vld [vmem:[%s1 + $0x8] sm:$0xff]
    %v20 = vld [vmem:[%s1 + $0x10] sm:$0xff]
    %v21 = vld [vmem:[%s1 + $0x18] sm:$0xff]
    %v22 = vld [vmem:[%s2] sm:$0x3]
    %v23 = vld [vmem:[%s3] sm:$0x1]
    %v24 = vld [vmem:[%s0] sm:$0xff]
    %v25 = vld [vmem:[%s0 + $0x8] sm:$0xff]
    %v26 = vld [vmem:[%s0 + $0x10] sm:$0xff]
    %v27 = vld [vmem:[%s0 + $0x18] sm:$0xff]
    %v28 = vld [vmem:[%s0 + $0x20] sm:$0xff]
    %v29 = vld [vmem:[%s0 + $0x28] sm:$0xff]
    %v30 = vld [vmem:[%s0 + $0x30] sm:$0xff]
    %v31 = vld [vmem:[%s0 + $0x38] sm:$0xff]
    %v32 = vld [vmem:[%s0 + $0x40] sm:$0xff]
    %v33 = vld [vmem:[%s0 + $0x48] sm:$0xff]
    %v34 = vld [vmem:[%s0 + $0x50] sm:$0xff]
    %v35 = vld [vmem:[%s0 + $0x58] sm:$0xff]
    %v36 = vld [vmem:[%s0 + $0x60] sm:$0xff]
    %v37 = vld [vmem:[%s0 + $0x68] sm:$0xff]
    %v38 = vld [vmem:[%s0 + $0x70] sm:$0xff]
    %v39 = vld [vmem:[%s0 + $0x78] sm:$0xff]
    %v40 = vld [vmem:[%s0 + $0x80] sm:$0xff]
    %v41 = vld [vmem:[%s0 + $0x88] sm:$0xff]
    %v42 = vld [vmem:[%s0 + $0x90] sm:$0xff]
    %v43 = vld [vmem:[%s0 + $0x98] sm:$0xff]
    %v44 = vld [vmem:[%s0 + $0xa0] sm:$0xff]
    %v45 = vld [vmem:[%s0 + $0xa8] sm:$0xff]
    %v46 = vld [vmem:[%s0 + $0xb0] sm:$0xff]
    %v47 = vld [vmem:[%s0 + $0xb8] sm:$0xff]
    %v48 = vld [vmem:[%s0 + $0xc0] sm:$0xff]
    %v49 = vld [vmem:[%s0 + $0xc8] sm:$0xff]
    %v50 = vld [vmem:[%s0 + $0xd0] sm:$0xff]
    %v51 = vld [vmem:[%s0 + $0xd8] sm:$0xff]
    %v52 = vld [vmem:[%s0 + $0xe0] sm:$0xff]
    %v53 = vld [vmem:[%s0 + $0xe8] sm:$0xff]
    %v54 = vld [vmem:[%s0 + $0xf0] sm:$0xff]
    %v55 = vld [vmem:[%s0 + $0xf8] sm:$0xff]
    %vm56 = vcmask 261120
    %v58 = vsel %vm56, %v24, 0
    %v61 = vsel %vm56, %v25, 0
    %v64 = vsel %vm56, %v26, 0
    %v67 = vsel %vm56, %v27, 0
    %v70 = vsel %vm56, %v28, 0
    %v73 = vsel %vm56, %v29, 0
    %v76 = vsel %vm56, %v30, 0
    %v79 = vsel %vm56, %v31, 0
    %v82 = vsel %vm56, %v32, 0
    %v85 = vsel %vm56, %v33, 0
    %v88 = vsel %vm56, %v34, 0
    %v91 = vsel %vm56, %v35, 0
    %v94 = vsel %vm56, %v36, 0
    %v97 = vsel %vm56, %v37, 0
    %v100 = vsel %vm56, %v38, 0
    %v103 = vsel %vm56, %v39, 0
    %v106 = vsel %vm56, %v40, 0
    %v109 = vsel %vm56, %v41, 0
    %v112 = vsel %vm56, %v42, 0
    %v115 = vsel %vm56, %v43, 0
    %v118 = vsel %vm56, %v44, 0
    %v121 = vsel %vm56, %v45, 0
    %v124 = vsel %vm56, %v46, 0
    %v127 = vsel %vm56, %v47, 0
    %v130 = vsel %vm56, %v48, 0
    %v133 = vsel %vm56, %v49, 0
    %v136 = vsel %vm56, %v50, 0
    %v139 = vsel %vm56, %v51, 0
    %v142 = vsel %vm56, %v52, 0
    %v145 = vsel %vm56, %v53, 0
    %v148 = vsel %vm56, %v54, 0
    %v151 = vsel %vm56, %v55, 0
    %153 = vmatprep.subr.mxu0 0.0
    %154 = vmatpush1.msra.mxu0 0.0
    %155 = vmatprep.subr.mxu0 0.0
    %156 = vmatpush1.msra.mxu0 0.0
    %157 = vmatprep.subr.mxu0 0.0
    %158 = vmatpush1.msra.mxu0 0.0
    %159 = vmatprep.subr.mxu0 0.0
    %160 = vmatpush1.msra.mxu0 0.0
    %161 = vmatprep.subr.mxu0 0.0
    %162 = vmatpush1.msra.mxu0 0.0
    %163 = vmatprep.subr.mxu0 0.0
    %164 = vmatpush1.msra.mxu0 0.0
    %165 = vmatprep.subr.mxu0 0.0
    %166 = vmatpush1.msra.mxu0 0.0
    %167 = vmatprep.subr.mxu0 0.0
    %168 = vmatpush1.msra.mxu0 0.0
    %169 = vmatprep.subr.mxu0 0.0
    %170 = vmatpush1.msra.mxu0 0.0
    %171 = vmatprep.subr.mxu0 0.0
    %172 = vmatpush1.msra.mxu0 0.0
    %173 = vmatprep.subr.mxu0 0.0
    %174 = vmatpush1.msra.mxu0 0.0
    %175 = vmatprep.subr.mxu0 0.0
    %176 = vmatpush1.msra.mxu0 0.0
    %177 = vmatprep.subr.mxu0 0.0
    %178 = vmatpush1.msra.mxu0 %v21
    %179 = vmatprep.subr.mxu0 0.0
    %180 = vmatpush1.msra.mxu0 %v20
    %181 = vmatprep.subr.mxu0 0.0
    %182 = vmatpush1.msra.mxu0 %v19
    %183 = vmatprep.subr.mxu0 0.0
    %184 = vmatpush1.msra.mxu0 %v18
    %185 = vmatprep.subr.mxu0 0.0
    %186 = vmatpush2.msra.mxu0 0.0
    %187 = vmatprep.subr.mxu0 0.0
    %188 = vmatpush2.msra.mxu0 0.0
    %189 = vmatprep.subr.mxu0 0.0
    %190 = vmatpush2.msra.mxu0 0.0
    %191 = vmatprep.subr.mxu0 0.0
    %192 = vmatpush2.msra.mxu0 0.0
    %193 = vmatprep.subr.mxu0 0.0
    %194 = vmatpush2.msra.mxu0 0.0
    %195 = vmatprep.subr.mxu0 0.0
    %196 = vmatpush2.msra.mxu0 0.0
    %197 = vmatprep.subr.mxu0 0.0
    %198 = vmatpush2.msra.mxu0 0.0
    %199 = vmatprep.subr.mxu0 0.0
    %200 = vmatpush2.msra.mxu0 0.0
    %201 = vmatprep.subr.mxu0 0.0
    %202 = vmatpush2.msra.mxu0 0.0
    %203 = vmatprep.subr.mxu0 0.0
    %204 = vmatpush2.msra.mxu0 0.0
    %205 = vmatprep.subr.mxu0 0.0
    %206 = vmatpush2.msra.mxu0 0.0
    %207 = vmatprep.subr.mxu0 0.0
    %208 = vmatpush2.msra.mxu0 0.0
    %209 = vmatprep.subr.mxu0 0.0
    %210 = vmatpush2.msra.mxu0 0.0
    %211 = vmatprep.subr.mxu0 0.0
    %212 = vmatpush2.msra.mxu0 0.0
    %213 = vmatprep.subr.mxu0 0.0
    %214 = vmatpush2.msra.mxu0 0.0
    %215 = vmatprep.subr.mxu0 0.0
    %216 = vmatpush2.msra.mxu0 0.0
    %217 = vmatprep.mubr.f32.mxu0 0.0
    %218 = vmatmul.mubr.f32.gmra.mxu0 %v58
    %v219 = vpop.f32.mrf.mxu0
    %v220 = vadd.f32 0.0, %v219
    %v221 = vpop.f32.mrf.mxu0
    %222 = vmatprep.mubr.f32.mxu0 0.0
    %223 = vmatmul.mubr.f32.gmra.mxu0 %v61
    %v224 = vpop.f32.mrf.mxu0
    %v225 = vadd.f32 0.0, %v224
    %v226 = vpop.f32.mrf.mxu0
    %227 = vmatprep.mubr.f32.mxu0 0.0
    %228 = vmatmul.mubr.f32.gmra.mxu0 %v64
    %v229 = vpop.f32.mrf.mxu0
    %v230 = vadd.f32 0.0, %v229
    %v231 = vpop.f32.mrf.mxu0
    %232 = vmatprep.mubr.f32.mxu0 0.0
    %233 = vmatmul.mubr.f32.gmra.mxu0 %v67
    %v234 = vpop.f32.mrf.mxu0
    %v235 = vadd.f32 0.0, %v234
    %v236 = vpop.f32.mrf.mxu0
    %237 = vmatprep.mubr.f32.mxu0 0.0
    %238 = vmatmul.mubr.f32.gmra.mxu0 %v70
    %v239 = vpop.f32.mrf.mxu0
    %v240 = vadd.f32 0.0, %v239
    %v241 = vpop.f32.mrf.mxu0
    %242 = vmatprep.mubr.f32.mxu0 0.0
    %243 = vmatmul.mubr.f32.gmra.mxu0 %v73
    %v244 = vpop.f32.mrf.mxu0
    %v245 = vadd.f32 0.0, %v244
    %v246 = vpop.f32.mrf.mxu0
    %247 = vmatprep.mubr.f32.mxu0 0.0
    %248 = vmatmul.mubr.f32.gmra.mxu0 %v76
    %v249 = vpop.f32.mrf.mxu0
    %v250 = vadd.f32 0.0, %v249
    %v251 = vpop.f32.mrf.mxu0
    %252 = vmatprep.mubr.f32.mxu0 0.0
    %253 = vmatmul.mubr.f32.gmra.mxu0 %v79
    %v254 = vpop.f32.mrf.mxu0
    %v255 = vadd.f32 0.0, %v254
    %v256 = vpop.f32.mrf.mxu0
    %257 = vmatprep.mubr.f32.mxu0 0.0
    %258 = vmatmul.mubr.f32.gmra.mxu0 %v82
    %v259 = vpop.f32.mrf.mxu0
    %v260 = vadd.f32 0.0, %v259
    %v261 = vpop.f32.mrf.mxu0
    %262 = vmatprep.mubr.f32.mxu0 0.0
    %263 = vmatmul.mubr.f32.gmra.mxu0 %v85
    %v264 = vpop.f32.mrf.mxu0
    %v265 = vadd.f32 0.0, %v264
    %v266 = vpop.f32.mrf.mxu0
    %267 = vmatprep.mubr.f32.mxu0 0.0
    %268 = vmatmul.mubr.f32.gmra.mxu0 %v88
    %v269 = vpop.f32.mrf.mxu0
    %v270 = vadd.f32 0.0, %v269
    %v271 = vpop.f32.mrf.mxu0
    %272 = vmatprep.mubr.f32.mxu0 0.0
    %273 = vmatmul.mubr.f32.gmra.mxu0 %v91
    %v274 = vpop.f32.mrf.mxu0
    %v275 = vadd.f32 0.0, %v274
    %v276 = vpop.f32.mrf.mxu0
    %277 = vmatprep.mubr.f32.mxu0 0.0
    %278 = vmatmul.mubr.f32.gmra.mxu0 %v94
    %v279 = vpop.f32.mrf.mxu0
    %v280 = vadd.f32 0.0, %v279
    %v281 = vpop.f32.mrf.mxu0
    %282 = vmatprep.mubr.f32.mxu0 0.0
    %283 = vmatmul.mubr.f32.gmra.mxu0 %v97
    %v284 = vpop.f32.mrf.mxu0
    %v285 = vadd.f32 0.0, %v284
    %v286 = vpop.f32.mrf.mxu0
    %287 = vmatprep.mubr.f32.mxu0 0.0
    %288 = vmatmul.mubr.f32.gmra.mxu0 %v100
    %v289 = vpop.f32.mrf.mxu0
    %v290 = vadd.f32 0.0, %v289
    %v291 = vpop.f32.mrf.mxu0
    %292 = vmatprep.mubr.f32.mxu0 0.0
    %293 = vmatmul.mubr.f32.gmra.mxu0 %v103
    %v294 = vpop.f32.mrf.mxu0
    %v295 = vadd.f32 0.0, %v294
    %v296 = vpop.f32.mrf.mxu0
    %297 = vmatprep.mubr.f32.mxu0 0.0
    %298 = vmatmul.mubr.f32.gmra.mxu0 %v106
    %v299 = vpop.f32.mrf.mxu0
    %v300 = vadd.f32 0.0, %v299
    %v301 = vpop.f32.mrf.mxu0
    %302 = vmatprep.mubr.f32.mxu0 0.0
    %303 = vmatmul.mubr.f32.gmra.mxu0 %v109
    %v304 = vpop.f32.mrf.mxu0
    %v305 = vadd.f32 0.0, %v304
    %v306 = vpop.f32.mrf.mxu0
    %307 = vmatprep.mubr.f32.mxu0 0.0
    %308 = vmatmul.mubr.f32.gmra.mxu0 %v112
    %v309 = vpop.f32.mrf.mxu0
    %v310 = vadd.f32 0.0, %v309
    %v311 = vpop.f32.mrf.mxu0
    %312 = vmatprep.mubr.f32.mxu0 0.0
    %313 = vmatmul.mubr.f32.gmra.mxu0 %v115
    %v314 = vpop.f32.mrf.mxu0
    %v315 = vadd.f32 0.0, %v314
    %v316 = vpop.f32.mrf.mxu0
    %317 = vmatprep.mubr.f32.mxu0 0.0
    %318 = vmatmul.mubr.f32.gmra.mxu0 %v118
    %v319 = vpop.f32.mrf.mxu0
    %v320 = vadd.f32 0.0, %v319
    %v321 = vpop.f32.mrf.mxu0
    %322 = vmatprep.mubr.f32.mxu0 0.0
    %323 = vmatmul.mubr.f32.gmra.mxu0 %v121
    %v324 = vpop.f32.mrf.mxu0
    %v325 = vadd.f32 0.0, %v324
    %v326 = vpop.f32.mrf.mxu0
    %327 = vmatprep.mubr.f32.mxu0 0.0
    %328 = vmatmul.mubr.f32.gmra.mxu0 %v124
    %v329 = vpop.f32.mrf.mxu0
    %v330 = vadd.f32 0.0, %v329
    %v331 = vpop.f32.mrf.mxu0
    %332 = vmatprep.mubr.f32.mxu0 0.0
    %333 = vmatmul.mubr.f32.gmra.mxu0 %v127
    %v334 = vpop.f32.mrf.mxu0
    %v335 = vadd.f32 0.0, %v334
    %v336 = vpop.f32.mrf.mxu0
    %337 = vmatprep.mubr.f32.mxu0 0.0
    %338 = vmatmul.mubr.f32.gmra.mxu0 %v130
    %v339 = vpop.f32.mrf.mxu0
    %v340 = vadd.f32 0.0, %v339
    %v341 = vpop.f32.mrf.mxu0
    %342 = vmatprep.mubr.f32.mxu0 0.0
    %343 = vmatmul.mubr.f32.gmra.mxu0 %v133
    %v344 = vpop.f32.mrf.mxu0
    %v345 = vadd.f32 0.0, %v344
    %v346 = vpop.f32.mrf.mxu0
    %347 = vmatprep.mubr.f32.mxu0 0.0
    %348 = vmatmul.mubr.f32.gmra.mxu0 %v136
    %v349 = vpop.f32.mrf.mxu0
    %v350 = vadd.f32 0.0, %v349
    %v351 = vpop.f32.mrf.mxu0
    %352 = vmatprep.mubr.f32.mxu0 0.0
    %353 = vmatmul.mubr.f32.gmra.mxu0 %v139
    %v354 = vpop.f32.mrf.mxu0
    %v355 = vadd.f32 0.0, %v354
    %v356 = vpop.f32.mrf.mxu0
    %357 = vmatprep.mubr.f32.mxu0 0.0
    %358 = vmatmul.mubr.f32.gmra.mxu0 %v142
    %v359 = vpop.f32.mrf.mxu0
    %v360 = vadd.f32 0.0, %v359
    %v361 = vpop.f32.mrf.mxu0
    %362 = vmatprep.mubr.f32.mxu0 0.0
    %363 = vmatmul.mubr.f32.gmra.mxu0 %v145
    %v364 = vpop.f32.mrf.mxu0
    %v365 = vadd.f32 0.0, %v364
    %v366 = vpop.f32.mrf.mxu0
    %367 = vmatprep.mubr.f32.mxu0 0.0
    %368 = vmatmul.mubr.f32.gmra.mxu0 %v148
    %v369 = vpop.f32.mrf.mxu0
    %v370 = vadd.f32 0.0, %v369
    %v371 = vpop.f32.mrf.mxu0
    %372 = vmatprep.mubr.f32.mxu0 0.0
    %373 = vmatmul.mubr.f32.gmra.mxu0 %v151
    %v374 = vpop.f32.mrf.mxu0
    %v375 = vadd.f32 0.0, %v374
    %v376 = vpop.f32.mrf.mxu0
    %377 = vdwg.mxu0
    %v378 = vlaneseq
    %v379 = vshrl.u32 %v378, 7
    %v380 = vsub.s32 0, %v379
    %v381 = vrot.slane %v22, %v380
    %v382 = vadd.f32 %v220, %v381
    %v383 = vadd.f32 %v225, %v381
    %v384 = vadd.f32 %v230, %v381
    %v385 = vadd.f32 %v235, %v381
    %v386 = vadd.f32 %v240, %v381
    %v387 = vadd.f32 %v245, %v381
    %v388 = vadd.f32 %v250, %v381
    %v389 = vadd.f32 %v255, %v381
    %v390 = vadd.f32 %v260, %v381
    %v391 = vadd.f32 %v265, %v381
    %v392 = vadd.f32 %v270, %v381
    %v393 = vadd.f32 %v275, %v381
    %v394 = vadd.f32 %v280, %v381
    %v395 = vadd.f32 %v285, %v381
    %v396 = vadd.f32 %v290, %v381
    %v397 = vadd.f32 %v295, %v381
    %v398 = vlaneseq
    %v399 = vshrl.u32 %v398, 7
    %v400 = vsub.s32 1, %v399
    %v401 = vrot.slane %v22, %v400
    %v402 = vadd.f32 %v300, %v401
    %v403 = vadd.f32 %v305, %v401
    %v404 = vadd.f32 %v310, %v401
    %v405 = vadd.f32 %v315, %v401
    %v406 = vadd.f32 %v320, %v401
    %v407 = vadd.f32 %v325, %v401
    %v408 = vadd.f32 %v330, %v401
    %v409 = vadd.f32 %v335, %v401
    %v410 = vadd.f32 %v340, %v401
    %v411 = vadd.f32 %v345, %v401
    %v412 = vadd.f32 %v350, %v401
    %v413 = vadd.f32 %v355, %v401
    %v414 = vadd.f32 %v360, %v401
    %v415 = vadd.f32 %v365, %v401
    %v416 = vadd.f32 %v370, %v401
    %v417 = vadd.f32 %v375, %v401
    %v418 = vmax.f32 %v382, %v402
    %v419 = vmax.f32 %v383, %v403
    %v420 = vmax.f32 %v384, %v404
    %v421 = vmax.f32 %v385, %v405
    %v422 = vmax.f32 %v386, %v406
    %v423 = vmax.f32 %v387, %v407
    %v424 = vmax.f32 %v388, %v408
    %v425 = vmax.f32 %v389, %v409
    %v426 = vmax.f32 %v390, %v410
    %v427 = vmax.f32 %v391, %v411
    %v428 = vmax.f32 %v392, %v412
    %v429 = vmax.f32 %v393, %v413
    %v430 = vmax.f32 %v394, %v414
    %v431 = vmax.f32 %v395, %v415
    %v432 = vmax.f32 %v396, %v416
    %v433 = vmax.f32 %v397, %v417
    %v434 = vsub.f32 %v382, %v418
    %v435 = vsub.f32 %v383, %v419
    %v436 = vsub.f32 %v384, %v420
    %v437 = vsub.f32 %v385, %v421
    %v438 = vsub.f32 %v386, %v422
    %v439 = vsub.f32 %v387, %v423
    %v440 = vsub.f32 %v388, %v424
    %v441 = vsub.f32 %v389, %v425
    %v442 = vsub.f32 %v390, %v426
    %v443 = vsub.f32 %v391, %v427
    %v444 = vsub.f32 %v392, %v428
    %v445 = vsub.f32 %v393, %v429
    %v446 = vsub.f32 %v394, %v430
    %v447 = vsub.f32 %v395, %v431
    %v448 = vsub.f32 %v396, %v432
    %v449 = vsub.f32 %v397, %v433
    %v450 = vmul.f32 %v434, 1.442695
    %v451 = vpow.pop %v450
    %v452 = vmul.f32 %v435, 1.442695
    %v453 = vpow.pop %v452
    %v454 = vmul.f32 %v436, 1.442695
    %v455 = vpow.pop %v454
    %v456 = vmul.f32 %v437, 1.442695
    %v457 = vpow.pop %v456
    %v458 = vmul.f32 %v438, 1.442695
    %v459 = vpow.pop %v458
    %v460 = vmul.f32 %v439, 1.442695
    %v461 = vpow.pop %v460
    %v462 = vmul.f32 %v440, 1.442695
    %v463 = vpow.pop %v462
    %v464 = vmul.f32 %v441, 1.442695
    %v465 = vpow.pop %v464
    %v466 = vmul.f32 %v442, 1.442695
    %v467 = vpow.pop %v466
    %v468 = vmul.f32 %v443, 1.442695
    %v469 = vpow.pop %v468
    %v470 = vmul.f32 %v444, 1.442695
    %v471 = vpow.pop %v470
    %v472 = vmul.f32 %v445, 1.442695
    %v473 = vpow.pop %v472
    %v474 = vmul.f32 %v446, 1.442695
    %v475 = vpow.pop %v474
    %v476 = vmul.f32 %v447, 1.442695
    %v477 = vpow.pop %v476
    %v478 = vmul.f32 %v448, 1.442695
    %v479 = vpow.pop %v478
    %v480 = vmul.f32 %v449, 1.442695
    %v481 = vpow.pop %v480
    %v482 = vsub.f32 %v402, %v418
    %v483 = vsub.f32 %v403, %v419
    %v484 = vsub.f32 %v404, %v420
    %v485 = vsub.f32 %v405, %v421
    %v486 = vsub.f32 %v406, %v422
    %v487 = vsub.f32 %v407, %v423
    %v488 = vsub.f32 %v408, %v424
    %v489 = vsub.f32 %v409, %v425
    %v490 = vsub.f32 %v410, %v426
    %v491 = vsub.f32 %v411, %v427
    %v492 = vsub.f32 %v412, %v428
    %v493 = vsub.f32 %v413, %v429
    %v494 = vsub.f32 %v414, %v430
    %v495 = vsub.f32 %v415, %v431
    %v496 = vsub.f32 %v416, %v432
    %v497 = vsub.f32 %v417, %v433
    %v498 = vmul.f32 %v482, 1.442695
    %v499 = vpow.pop %v498
    %v500 = vmul.f32 %v483, 1.442695
    %v501 = vpow.pop %v500
    %v502 = vmul.f32 %v484, 1.442695
    %v503 = vpow.pop %v502
    %v504 = vmul.f32 %v485, 1.442695
    %v505 = vpow.pop %v504
    %v506 = vmul.f32 %v486, 1.442695
    %v507 = vpow.pop %v506
    %v508 = vmul.f32 %v487, 1.442695
    %v509 = vpow.pop %v508
    %v510 = vmul.f32 %v488, 1.442695
    %v511 = vpow.pop %v510
    %v512 = vmul.f32 %v489, 1.442695
    %v513 = vpow.pop %v512
    %v514 = vmul.f32 %v490, 1.442695
    %v515 = vpow.pop %v514
    %v516 = vmul.f32 %v491, 1.442695
    %v517 = vpow.pop %v516
    %v518 = vmul.f32 %v492, 1.442695
    %v519 = vpow.pop %v518
    %v520 = vmul.f32 %v493, 1.442695
    %v521 = vpow.pop %v520
    %v522 = vmul.f32 %v494, 1.442695
    %v523 = vpow.pop %v522
    %v524 = vmul.f32 %v495, 1.442695
    %v525 = vpow.pop %v524
    %v526 = vmul.f32 %v496, 1.442695
    %v527 = vpow.pop %v526
    %v528 = vmul.f32 %v497, 1.442695
    %v529 = vpow.pop %v528
    %v530 = vadd.f32 %v451, %v499
    %v531 = vadd.f32 %v453, %v501
    %v532 = vadd.f32 %v455, %v503
    %v533 = vadd.f32 %v457, %v505
    %v534 = vadd.f32 %v459, %v507
    %v535 = vadd.f32 %v461, %v509
    %v536 = vadd.f32 %v463, %v511
    %v537 = vadd.f32 %v465, %v513
    %v538 = vadd.f32 %v467, %v515
    %v539 = vadd.f32 %v469, %v517
    %v540 = vadd.f32 %v471, %v519
    %v541 = vadd.f32 %v473, %v521
    %v542 = vadd.f32 %v475, %v523
    %v543 = vadd.f32 %v477, %v525
    %v544 = vadd.f32 %v479, %v527
    %v545 = vadd.f32 %v481, %v529
    %v546 = vrcp.pop %v530
    %v547 = vrcp.pop %v531
    %v548 = vrcp.pop %v532
    %v549 = vrcp.pop %v533
    %v550 = vrcp.pop %v534
    %v551 = vrcp.pop %v535
    %v552 = vrcp.pop %v536
    %v553 = vrcp.pop %v537
    %v554 = vrcp.pop %v538
    %v555 = vrcp.pop %v539
    %v556 = vrcp.pop %v540
    %v557 = vrcp.pop %v541
    %v558 = vrcp.pop %v542
    %v559 = vrcp.pop %v543
    %v560 = vrcp.pop %v544
    %v561 = vrcp.pop %v545
    %v563 = vlaneseq
    %v564 = vshrl.u32 %v563, 7
    %v565 = vsub.s32 0, %v564
    %v566 = vrot.slane %v23, %v565
    %v568 = vmul.f32 %v546, %v566
    %v569 = vmul.f32 %v547, %v566
    %v570 = vmul.f32 %v548, %v566
    %v571 = vmul.f32 %v549, %v566
    %v572 = vmul.f32 %v550, %v566
    %v573 = vmul.f32 %v551, %v566
    %v574 = vmul.f32 %v552, %v566
    %v575 = vmul.f32 %v553, %v566
    %v576 = vmul.f32 %v554, %v566
    %v577 = vmul.f32 %v555, %v566
    %v578 = vmul.f32 %v556, %v566
    %v579 = vmul.f32 %v557, %v566
    %v580 = vmul.f32 %v558, %v566
    %v581 = vmul.f32 %v559, %v566
    %v582 = vmul.f32 %v560, %v566
    %v583 = vmul.f32 %v561, %v566
    %v584 = vmul.f32 %v451, %v568
    %v585 = vmul.f32 %v453, %v569
    %v586 = vmul.f32 %v455, %v570
    %v587 = vmul.f32 %v457, %v571
    %v588 = vmul.f32 %v459, %v572
    %v589 = vmul.f32 %v461, %v573
    %v590 = vmul.f32 %v463, %v574
    %v591 = vmul.f32 %v465, %v575
    %v592 = vmul.f32 %v467, %v576
    %v593 = vmul.f32 %v469, %v577
    %v594 = vmul.f32 %v471, %v578
    %v595 = vmul.f32 %v473, %v579
    %v596 = vmul.f32 %v475, %v580
    %v597 = vmul.f32 %v477, %v581
    %v598 = vmul.f32 %v479, %v582
    %v599 = vmul.f32 %v481, %v583
    %v600 = vsel %vm56, %v584, 0.0
    %601 = vadd.xlane.f32.xlu0 %v600
    %v602 = vpop.xlane.xlu0 %601
    %v603 = vsel %vm56, %v585, 0.0
    %604 = vadd.xlane.f32.xlu0 %v603
    %v605 = vpop.xlane.xlu0 %604
    %v606 = vsel %vm56, %v586, 0.0
    %607 = vadd.xlane.f32.xlu0 %v606
    %v608 = vpop.xlane.xlu0 %607
    %v609 = vsel %vm56, %v587, 0.0
    %610 = vadd.xlane.f32.xlu0 %v609
    %v611 = vpop.xlane.xlu0 %610
    %v612 = vsel %vm56, %v588, 0.0
    %613 = vadd.xlane.f32.xlu0 %v612
    %v614 = vpop.xlane.xlu0 %613
    %v615 = vsel %vm56, %v589, 0.0
    %616 = vadd.xlane.f32.xlu0 %v615
    %v617 = vpop.xlane.xlu0 %616
    %v618 = vsel %vm56, %v590, 0.0
    %619 = vadd.xlane.f32.xlu0 %v618
    %v620 = vpop.xlane.xlu0 %619
    %v621 = vsel %vm56, %v591, 0.0
    %622 = vadd.xlane.f32.xlu0 %v621
    %v623 = vpop.xlane.xlu0 %622
    %v624 = vsel %vm56, %v592, 0.0
    %625 = vadd.xlane.f32.xlu0 %v624
    %v626 = vpop.xlane.xlu0 %625
    %v627 = vsel %vm56, %v593, 0.0
    %628 = vadd.xlane.f32.xlu0 %v627
    %v629 = vpop.xlane.xlu0 %628
    %v630 = vsel %vm56, %v594, 0.0
    %631 = vadd.xlane.f32.xlu0 %v630
    %v632 = vpop.xlane.xlu0 %631
    %v633 = vsel %vm56, %v595, 0.0
    %634 = vadd.xlane.f32.xlu0 %v633
    %v635 = vpop.xlane.xlu0 %634
    %v636 = vsel %vm56, %v596, 0.0
    %637 = vadd.xlane.f32.xlu0 %v636
    %v638 = vpop.xlane.xlu0 %637
    %v639 = vsel %vm56, %v597, 0.0
    %640 = vadd.xlane.f32.xlu0 %v639
    %v641 = vpop.xlane.xlu0 %640
    %v642 = vsel %vm56, %v598, 0.0
    %643 = vadd.xlane.f32.xlu0 %v642
    %v644 = vpop.xlane.xlu0 %643
    %v645 = vsel %vm56, %v599, 0.0
    %646 = vadd.xlane.f32.xlu0 %v645
    %v647 = vpop.xlane.xlu0 %646
    %v648 = vmax.f32 %v602, 0.0
    %v649 = vmax.f32 %v605, 0.0
    %v650 = vmax.f32 %v608, 0.0
    %v651 = vmax.f32 %v611, 0.0
    %v652 = vmax.f32 %v614, 0.0
    %v653 = vmax.f32 %v617, 0.0
    %v654 = vmax.f32 %v620, 0.0
    %v655 = vmax.f32 %v623, 0.0
    %v656 = vmax.f32 %v626, 0.0
    %v657 = vmax.f32 %v629, 0.0
    %v658 = vmax.f32 %v632, 0.0
    %v659 = vmax.f32 %v635, 0.0
    %v660 = vmax.f32 %v638, 0.0
    %v661 = vmax.f32 %v641, 0.0
    %v662 = vmax.f32 %v644, 0.0
    %v663 = vmax.f32 %v647, 0.0
    %v680 = vlaneseq
    %v681 = vand.u32 %v680, 127
    %v682 = vlaneseq
    %v683 = vshrl.u32 %v682, 7
    %v684 = vsub.s32 %v681, %v683
    %v685 = vrot.slane %v648, %v684
    %v686 = vadd.s32 %v681, 4294967288
    %v687 = vlaneseq
    %v688 = vshrl.u32 %v687, 7
    %v689 = vsub.s32 %v686, %v688
    %v690 = vrot.slane %v649, %v689
    %vm691 = vcmask 130112
    %v692 = vsel %vm691, %v690, %v685
    %v693 = vadd.s32 %v681, 4294967280
    %v694 = vlaneseq
    %v695 = vshrl.u32 %v694, 7
    %v696 = vsub.s32 %v693, %v695
    %v697 = vrot.slane %v650, %v696
    %vm698 = vcmask 195712
    %v699 = vsel %vm698, %v697, %v692
    %v700 = vadd.s32 %v681, 4294967272
    %v701 = vlaneseq
    %v702 = vshrl.u32 %v701, 7
    %v703 = vsub.s32 %v700, %v702
    %v704 = vrot.slane %v651, %v703
    %vm705 = vcmask 261312
    %v706 = vsel %vm705, %v704, %v699
    %v707 = vadd.s32 %v681, 4294967264
    %v708 = vlaneseq
    %v709 = vshrl.u32 %v708, 7
    %v710 = vsub.s32 %v707, %v709
    %v711 = vrot.slane %v652, %v710
    %vm712 = vcmask 326912
    %v713 = vsel %vm712, %v711, %v706
    %v714 = vadd.s32 %v681, 4294967256
    %v715 = vlaneseq
    %v716 = vshrl.u32 %v715, 7
    %v717 = vsub.s32 %v714, %v716
    %v718 = vrot.slane %v653, %v717
    %vm719 = vcmask 392512
    %v720 = vsel %vm719, %v718, %v713
    %v721 = vadd.s32 %v681, 4294967248
    %v722 = vlaneseq
    %v723 = vshrl.u32 %v722, 7
    %v724 = vsub.s32 %v721, %v723
    %v725 = vrot.slane %v654, %v724
    %vm726 = vcmask 458112
    %v727 = vsel %vm726, %v725, %v720
    %v728 = vadd.s32 %v681, 4294967240
    %v729 = vlaneseq
    %v730 = vshrl.u32 %v729, 7
    %v731 = vsub.s32 %v728, %v730
    %v732 = vrot.slane %v655, %v731
    %vm733 = vcmask 523712
    %v734 = vsel %vm733, %v732, %v727
    %v735 = vadd.s32 %v681, 4294967232
    %v736 = vlaneseq
    %v737 = vshrl.u32 %v736, 7
    %v738 = vsub.s32 %v735, %v737
    %v739 = vrot.slane %v656, %v738
    %vm740 = vcmask 589312
    %v741 = vsel %vm740, %v739, %v734
    %v742 = vadd.s32 %v681, 4294967224
    %v743 = vlaneseq
    %v744 = vshrl.u32 %v743, 7
    %v745 = vsub.s32 %v742, %v744
    %v746 = vrot.slane %v657, %v745
    %vm747 = vcmask 654912
    %v748 = vsel %vm747, %v746, %v741
    %v749 = vadd.s32 %v681, 4294967216
    %v750 = vlaneseq
    %v751 = vshrl.u32 %v750, 7
    %v752 = vsub.s32 %v749, %v751
    %v753 = vrot.slane %v658, %v752
    %vm754 = vcmask 720512
    %v755 = vsel %vm754, %v753, %v748
    %v756 = vadd.s32 %v681, 4294967208
    %v757 = vlaneseq
    %v758 = vshrl.u32 %v757, 7
    %v759 = vsub.s32 %v756, %v758
    %v760 = vrot.slane %v659, %v759
    %vm761 = vcmask 786112
    %v762 = vsel %vm761, %v760, %v755
    %v763 = vadd.s32 %v681, 4294967200
    %v764 = vlaneseq
    %v765 = vshrl.u32 %v764, 7
    %v766 = vsub.s32 %v763, %v765
    %v767 = vrot.slane %v660, %v766
    %vm768 = vcmask 851712
    %v769 = vsel %vm768, %v767, %v762
    %v770 = vadd.s32 %v681, 4294967192
    %v771 = vlaneseq
    %v772 = vshrl.u32 %v771, 7
    %v773 = vsub.s32 %v770, %v772
    %v774 = vrot.slane %v661, %v773
    %vm775 = vcmask 917312
    %v776 = vsel %vm775, %v774, %v769
    %v777 = vadd.s32 %v681, 4294967184
    %v778 = vlaneseq
    %v779 = vshrl.u32 %v778, 7
    %v780 = vsub.s32 %v777, %v779
    %v781 = vrot.slane %v662, %v780
    %vm782 = vcmask 982912
    %v783 = vsel %vm782, %v781, %v776
    %v784 = vadd.s32 %v681, 4294967176
    %v785 = vlaneseq
    %v786 = vshrl.u32 %v785, 7
    %v787 = vsub.s32 %v784, %v786
    %v788 = vrot.slane %v663, %v787
    %vm789 = vcmask 1048512
    %v790 = vsel %vm789, %v788, %v783
    %792 = vst [vmem:[#allocation2] sm:$0x1] %v790
    %v793 = vmul.f32 %v499, %v568
    %v794 = vmul.f32 %v501, %v569
    %v795 = vmul.f32 %v503, %v570
    %v796 = vmul.f32 %v505, %v571
    %v797 = vmul.f32 %v507, %v572
    %v798 = vmul.f32 %v509, %v573
    %v799 = vmul.f32 %v511, %v574
    %v800 = vmul.f32 %v513, %v575
    %v801 = vmul.f32 %v515, %v576
    %v802 = vmul.f32 %v517, %v577
    %v803 = vmul.f32 %v519, %v578
    %v804 = vmul.f32 %v521, %v579
    %v805 = vmul.f32 %v523, %v580
    %v806 = vmul.f32 %v525, %v581
    %v807 = vmul.f32 %v527, %v582
    %v808 = vmul.f32 %v529, %v583
    %v809 = vsel %vm56, %v793, 0.0
    %810 = vadd.xlane.f32.xlu0 %v809
    %v811 = vpop.xlane.xlu0 %810
    %v812 = vsel %vm56, %v794, 0.0
    %813 = vadd.xlane.f32.xlu0 %v812
    %v814 = vpop.xlane.xlu0 %813
    %v815 = vsel %vm56, %v795, 0.0
    %816 = vadd.xlane.f32.xlu0 %v815
    %v817 = vpop.xlane.xlu0 %816
    %v818 = vsel %vm56, %v796, 0.0
    %819 = vadd.xlane.f32.xlu0 %v818
    %v820 = vpop.xlane.xlu0 %819
    %v821 = vsel %vm56, %v797, 0.0
    %822 = vadd.xlane.f32.xlu0 %v821
    %v823 = vpop.xlane.xlu0 %822
    %v824 = vsel %vm56, %v798, 0.0
    %825 = vadd.xlane.f32.xlu0 %v824
    %v826 = vpop.xlane.xlu0 %825
    %v827 = vsel %vm56, %v799, 0.0
    %828 = vadd.xlane.f32.xlu0 %v827
    %v829 = vpop.xlane.xlu0 %828
    %v830 = vsel %vm56, %v800, 0.0
    %831 = vadd.xlane.f32.xlu0 %v830
    %v832 = vpop.xlane.xlu0 %831
    %v833 = vsel %vm56, %v801, 0.0
    %834 = vadd.xlane.f32.xlu0 %v833
    %v835 = vpop.xlane.xlu0 %834
    %v836 = vsel %vm56, %v802, 0.0
    %837 = vadd.xlane.f32.xlu0 %v836
    %v838 = vpop.xlane.xlu0 %837
    %v839 = vsel %vm56, %v803, 0.0
    %840 = vadd.xlane.f32.xlu0 %v839
    %v841 = vpop.xlane.xlu0 %840
    %v842 = vsel %vm56, %v804, 0.0
    %843 = vadd.xlane.f32.xlu0 %v842
    %v844 = vpop.xlane.xlu0 %843
    %v845 = vsel %vm56, %v805, 0.0
    %846 = vadd.xlane.f32.xlu0 %v845
    %v847 = vpop.xlane.xlu0 %846
    %v848 = vsel %vm56, %v806, 0.0
    %849 = vadd.xlane.f32.xlu0 %v848
    %v850 = vpop.xlane.xlu0 %849
    %v851 = vsel %vm56, %v807, 0.0
    %852 = vadd.xlane.f32.xlu0 %v851
    %v853 = vpop.xlane.xlu0 %852
    %v854 = vsel %vm56, %v808, 0.0
    %855 = vadd.xlane.f32.xlu0 %v854
    %v856 = vpop.xlane.xlu0 %855
    %v857 = vmax.f32 %v811, 0.0
    %v858 = vmax.f32 %v814, 0.0
    %v859 = vmax.f32 %v817, 0.0
    %v860 = vmax.f32 %v820, 0.0
    %v861 = vmax.f32 %v823, 0.0
    %v862 = vmax.f32 %v826, 0.0
    %v863 = vmax.f32 %v829, 0.0
    %v864 = vmax.f32 %v832, 0.0
    %v865 = vmax.f32 %v835, 0.0
    %v866 = vmax.f32 %v838, 0.0
    %v867 = vmax.f32 %v841, 0.0
    %v868 = vmax.f32 %v844, 0.0
    %v869 = vmax.f32 %v847, 0.0
    %v870 = vmax.f32 %v850, 0.0
    %v871 = vmax.f32 %v853, 0.0
    %v872 = vmax.f32 %v856, 0.0
    %v889 = vlaneseq
    %v890 = vshrl.u32 %v889, 7
    %v891 = vsub.s32 %v681, %v890
    %v892 = vrot.slane %v857, %v891
    %v893 = vlaneseq
    %v894 = vshrl.u32 %v893, 7
    %v895 = vsub.s32 %v686, %v894
    %v896 = vrot.slane %v858, %v895
    %v897 = vsel %vm691, %v896, %v892
    %v898 = vlaneseq
    %v899 = vshrl.u32 %v898, 7
    %v900 = vsub.s32 %v693, %v899
    %v901 = vrot.slane %v859, %v900
    %v902 = vsel %vm698, %v901, %v897
    %v903 = vlaneseq
    %v904 = vshrl.u32 %v903, 7
    %v905 = vsub.s32 %v700, %v904
    %v906 = vrot.slane %v860, %v905
    %v907 = vsel %vm705, %v906, %v902
    %v908 = vlaneseq
    %v909 = vshrl.u32 %v908, 7
    %v910 = vsub.s32 %v707, %v909
    %v911 = vrot.slane %v861, %v910
    %v912 = vsel %vm712, %v911, %v907
    %v913 = vlaneseq
    %v914 = vshrl.u32 %v913, 7
    %v915 = vsub.s32 %v714, %v914
    %v916 = vrot.slane %v862, %v915
    %v917 = vsel %vm719, %v916, %v912
    %v918 = vlaneseq
    %v919 = vshrl.u32 %v918, 7
    %v920 = vsub.s32 %v721, %v919
    %v921 = vrot.slane %v863, %v920
    %v922 = vsel %vm726, %v921, %v917
    %v923 = vlaneseq
    %v924 = vshrl.u32 %v923, 7
    %v925 = vsub.s32 %v728, %v924
    %v926 = vrot.slane %v864, %v925
    %v927 = vsel %vm733, %v926, %v922
    %v928 = vlaneseq
    %v929 = vshrl.u32 %v928, 7
    %v930 = vsub.s32 %v735, %v929
    %v931 = vrot.slane %v865, %v930
    %v932 = vsel %vm740, %v931, %v927
    %v933 = vlaneseq
    %v934 = vshrl.u32 %v933, 7
    %v935 = vsub.s32 %v742, %v934
    %v936 = vrot.slane %v866, %v935
    %v937 = vsel %vm747, %v936, %v932
    %v938 = vlaneseq
    %v939 = vshrl.u32 %v938, 7
    %v940 = vsub.s32 %v749, %v939
    %v941 = vrot.slane %v867, %v940
    %v942 = vsel %vm754, %v941, %v937
    %v943 = vlaneseq
    %v944 = vshrl.u32 %v943, 7
    %v945 = vsub.s32 %v756, %v944
    %v946 = vrot.slane %v868, %v945
    %v947 = vsel %vm761, %v946, %v942
    %v948 = vlaneseq
    %v949 = vshrl.u32 %v948, 7
    %v950 = vsub.s32 %v763, %v949
    %v951 = vrot.slane %v869, %v950
    %v952 = vsel %vm768, %v951, %v947
    %v953 = vlaneseq
    %v954 = vshrl.u32 %v953, 7
    %v955 = vsub.s32 %v770, %v954
    %v956 = vrot.slane %v870, %v955
    %v957 = vsel %vm775, %v956, %v952
    %v958 = vlaneseq
    %v959 = vshrl.u32 %v958, 7
    %v960 = vsub.s32 %v777, %v959
    %v961 = vrot.slane %v871, %v960
    %v962 = vsel %vm782, %v961, %v957
    %v963 = vlaneseq
    %v964 = vshrl.u32 %v963, 7
    %v965 = vsub.s32 %v784, %v964
    %v966 = vrot.slane %v872, %v965
    %v967 = vsel %vm789, %v966, %v962
    %969 = vst [vmem:[#allocation2 + $0x1] sm:$0x1] %v967
    // Predicated region
    $region18: #{tpu_custom_call.1} parent=1 // pred_check
      _
    $region19: #{tpu_custom_call.1} parent=1 // pred_check_branch
      %971 = sbr.rel (0) target = $region21
    $region20: #{tpu_custom_call.1} parent=1 // pred_region
      %s973 = ssub.s32 32, 32
      %974 = vsyncadd [#allocation3], %s973
      %s976 = sshll.u32 [#allocation2], 4
      %s977 = int_to_ptr.vmem [resolvable:$true] %s976
      %979 = dma.vmem_to_hbm [thread:$0]  %s977, 32, %s4, [#allocation3]
    $region21: #{tpu_custom_call.1} parent=1 // pred_fallthru
      _
    // Predicated region
    $region22: #{tpu_custom_call.1} parent=1 // pred_check
      _
    $region23: #{tpu_custom_call.1} parent=1 // pred_check_branch
      %981 = sbr.rel (0) target = $region25
    $region24: #{tpu_custom_call.1} parent=1 // pred_region
      %982 = dma.done [#allocation3], 32
    $region25: #{tpu_custom_call.1} parent=1 // pred_fallthru
      _
    %983 = vsyncpa [#allocation3], 1

</llo_original>
